<compile_context>
chip_gen: v7x
topology: tpu7x:2x2x1
jax: 0.10.0
libtpu: 0.0.40
codegen_flags: <defaults>
</compile_context>

<pallas_src>
import math
from functools import partial

import jax
import jax.numpy as jnp
import numpy as np
from jax.experimental import pallas as pl
from jax.experimental.pallas import tpu as pltpu


def _round_up(x, m):
    return pl.cdiv(x, m) * m


def _vmem_budget_bytes():
    """Per-generation scoped-VMEM cap (leave headroom for Mosaic scratch)."""
    try:
        info = pltpu.get_tpu_info()
        phys = int(getattr(info, "vmem_capacity_bytes", 64 * 2**20))
    except Exception:  # query unavailable -> be conservative (v7x-safe)
        phys = 64 * 2**20
    if phys >= 96 * 2**20:      # v5e / v6e: 128 MiB physical
        return 100 * 2**20
    return 48 * 2**20           # v7x: 64 MiB per TensorCore


def _patch_embed_kernel(p_ref, w_ref, b_ref, o_ref):
    # p_ref: (TM, K) patch tile, w_ref: (K, N) resident projection,
    # b_ref: (1, N) resident bias (f32). Accumulate in f32 on the MXU.
    acc = jnp.dot(p_ref[...], w_ref[...], preferred_element_type=jnp.float32)
    acc = acc + b_ref[...]
    o_ref[...] = acc.astype(o_ref.dtype)


@partial(jax.jit,
         static_argnames=("patch_size", "stride", "compute_dtype", "out_dtype", "tm"))
def patch_embed_forward(x, weight, bias, patch_size, stride,
                        compute_dtype=jnp.bfloat16, out_dtype=None, tm=512):
    """x: (B, C, H, W) NCHW. weight: (E, C, ph, pw). bias: (E,).

    Returns (B, num_patches, E) == Conv2d(stride=patch) -> flatten(2).transpose(1,2).
    out_dtype=None keeps x.dtype (PyTorch parity); pass jnp.bfloat16 to halve the
    output HBM writeback when the downstream consumer is bf16.
    """
    B, C, H, W = x.shape
    E, Cw, ph, pw = weight.shape
    assert C == Cw
    assert stride == ph == pw, "kernel assumes non-overlapping patches (stride == patch_size)"
    gh = (H - ph) // stride + 1
    gw = (W - pw) // stride + 1
    # im2col reshape below requires exact tiling.
    assert H == gh * ph and W == gw * pw, "H/W must be multiples of the patch size"
    num_patches = gh * gw

    out_dtype = x.dtype if out_dtype is None else jnp.dtype(out_dtype)

    # Single fused im2col pass: cast + (B,C,gh,ph,gw,pw) -> (B,gh,gw,C,ph,pw) -> (M,K).
    # (c, i, j) feature order matches PyTorch Conv2d weight flattening; the image's
    # minor W/pw axis stays in the lane position through the transpose.
    patches = (x.astype(compute_dtype)
               .reshape(B, C, gh, ph, gw, pw)
               .transpose(0, 2, 4, 1, 3, 5)
               .reshape(B * num_patches, C * ph * pw))
    w2d = weight.astype(compute_dtype).reshape(E, C * ph * pw).T   # (K, E), tiny, once
    b2d = bias.astype(jnp.float32).reshape(1, E)                   # (1, E) f32

    M = B * num_patches
    K = C * ph * pw
    N = E

    # Tile M only. K / N blocks span the full array dims (legal for any size; Mosaic
    # pads inside VMEM), so there is NO HBM pad pass and NO post-kernel slice.
    tm = _round_up(max(int(tm), 8), 8)                      # defensive: multiple of 8
    # Keep >= ~8 grid steps so double-buffering + dual-TC sharding (v7x) engage even
    # for small M; cap at `tm` for large M.
    TM = max(8, min(tm, _round_up(pl.cdiv(M, 8), 8)))
    grid_m = pl.cdiv(M, TM)

    in_item = jnp.dtype(compute_dtype).itemsize
    out_item = jnp.dtype(out_dtype).itemsize

    # Actual footprint (buffers counted at their real multiplicity) + small slack.
    needed = (2 * TM * K * in_item        # double-buffered patch tiles
              + 2 * TM * N * out_item     # double-buffered output tiles
              + 2 * K * N * in_item       # resident weight (default 2 buffers)
              + 2 * N * 4                 # resident bias
              + 2 * 2**20)                # Mosaic internal scratch slack
    vmem_limit = int(min(_vmem_budget_bytes(), max(32 * 2**20, needed)))

    cost = pl.CostEstimate(
        flops=2 * M * K * N,
        transcendentals=0,
        bytes_accessed=(M * K * in_item + K * N * in_item + N * 4 + M * N * out_item),
    )

    out = pl.pallas_call(
        _patch_embed_kernel,
        out_shape=jax.ShapeDtypeStruct((M, N), out_dtype),
        grid_spec=pltpu.PrefetchScalarGridSpec(
            num_scalar_prefetch=0,
            grid=(grid_m,),
            in_specs=[
                pl.BlockSpec((TM, K), lambda i: (i, 0)),    # patch tile (full K)
                pl.BlockSpec((K, N), lambda i: (0, 0)),     # weight (resident)
                pl.BlockSpec((1, N), lambda i: (0, 0)),     # bias (resident, f32)
            ],
            out_specs=pl.BlockSpec((TM, N), lambda i: (i, 0)),
        ),
        compiler_params=pltpu.CompilerParams(
            dimension_semantics=("parallel",),
            vmem_limit_bytes=vmem_limit,
        ),
        cost_estimate=cost,
    )(patches, w2d, b2d)

    # (B, num_patches, embed_dim) == flatten(2).transpose(1, 2); no slice needed.
    return out.reshape(B, num_patches, E)


def _reference(x, weight, bias, stride):
    """Pure-JAX reference: strided conv (NCHW, OIHW) then flatten+transpose."""
    y = jax.lax.conv_general_dilated(
        x, weight, window_strides=(stride, stride), padding="VALID",
        dimension_numbers=("NCHW", "OIHW", "NCHW"))
    y = y + bias.reshape(1, -1, 1, 1)
    B, E, gh, gw = y.shape
    return y.reshape(B, E, gh * gw).transpose(0, 2, 1)


if __name__ == "__main__":
    # Small config consistent with PatchEmbed(img_size=16, patch_size=4, stride=4,
    #                                          in_chans=4, embed_dim=32)
    B, C, H, W = 2, 4, 16, 16
    patch_size = 4
    stride = 4
    embed_dim = 32

    key = jax.random.PRNGKey(0)
    kx, kw, kb = jax.random.split(key, 3)

    x = jax.random.normal(kx, (B, C, H, W), dtype=jnp.float32)
    fan_in = C * patch_size * patch_size
    wbound = 1.0 / math.sqrt(fan_in)
    weight = jax.random.uniform(kw, (embed_dim, C, patch_size, patch_size),
                                dtype=jnp.float32, minval=-wbound, maxval=wbound)
    bias = jax.random.uniform(kb, (embed_dim,), dtype=jnp.float32,
                              minval=-wbound, maxval=wbound)

    ref = jax.block_until_ready(_reference(x, weight, bias, stride))
    expected_shape = (B, (H // stride) * (W // stride), embed_dim)

    # Exact path: f32 MXU inputs, tight tolerance vs the f32 conv reference.
    out_f32 = jax.block_until_ready(
        patch_embed_forward(x, weight, bias, patch_size, stride,
                            compute_dtype=jnp.float32))
    assert out_f32.shape == expected_shape, out_f32.shape
    assert out_f32.dtype == x.dtype
    assert np.allclose(np.asarray(out_f32), np.asarray(ref), atol=1e-5, rtol=1e-5)

    # Fast (default) path: bf16 MXU inputs, f32 accumulation, output in x.dtype.
    out_bf16 = jax.block_until_ready(
        patch_embed_forward(x, weight, bias, patch_size, stride))
    assert out_bf16.shape == expected_shape, out_bf16.shape
    assert np.allclose(np.asarray(out_bf16), np.asarray(ref), atol=5e-2, rtol=5e-2)

    # bf16 output writeback path (for bf16 consumers; halves output HBM bytes).
    out_bf16o = jax.block_until_ready(
        patch_embed_forward(x, weight, bias, patch_size, stride,
                            out_dtype=jnp.bfloat16))
    assert out_bf16o.shape == expected_shape, out_bf16o.shape
    assert out_bf16o.dtype == jnp.bfloat16
    assert np.allclose(np.asarray(out_bf16o.astype(jnp.float32)), np.asarray(ref),
                       atol=5e-2, rtol=5e-2)

    print("KERNEL_OK")
</pallas_src>

<mosaic_0001>
module attributes {stable_mosaic.version = 11 : i64} {
  func.func @_patch_embed_kernel(%arg0: i32, %arg1: memref<8x64xf32, #tpu.memory_space<vmem>>, %arg2: memref<64x32xf32, #tpu.memory_space<vmem>>, %arg3: memref<1x32xf32, #tpu.memory_space<vmem>>, %arg4: memref<8x32xf32, #tpu.memory_space<vmem>>) attributes {dimension_semantics = [#tpu.dimension_semantics<parallel>], iteration_bounds = array<i64: 4>, scalar_prefetch = 0 : i64, scratch_operands = 0 : i64, tpu.core_type = #tpu.core_type<tc>, window_params = [{transform_indices = @transform_0, window_bounds = array<i64: 8, 64>}, {pipeline_mode = #tpu.pipeline_mode<synchronous>, transform_indices = @transform_1, window_bounds = array<i64: 64, 32>}, {pipeline_mode = #tpu.pipeline_mode<synchronous>, transform_indices = @transform_2, window_bounds = array<i64: 1, 32>}, {transform_indices = @transform_3, window_bounds = array<i64: 8, 32>}]} {
    %c0 = arith.constant 0 : index
    %c0_0 = arith.constant 0 : index
    %0 = vector.load %arg1[%c0, %c0_0] : memref<8x64xf32, #tpu.memory_space<vmem>>, vector<8x64xf32>
    %c0_1 = arith.constant 0 : index
    %c0_2 = arith.constant 0 : index
    %1 = vector.load %arg2[%c0_1, %c0_2] : memref<64x32xf32, #tpu.memory_space<vmem>>, vector<64x32xf32>
    %cst = arith.constant dense<0.000000e+00> : vector<8x32xf32>
    %2 = tpu.matmul %0, %1, %cst {dimension_numbers = #tpu.dot_dimension_numbers<[1], [0], [0], [1], [0, 0, 1, 1], [], []>} : vector<8x64xf32>, vector<64x32xf32>, vector<8x32xf32> -> vector<8x32xf32>
    %c0_3 = arith.constant 0 : index
    %c0_4 = arith.constant 0 : index
    %3 = vector.load %arg3[%c0_3, %c0_4] : memref<1x32xf32, #tpu.memory_space<vmem>>, vector<1x32xf32>
    %4 = vector.broadcast %3 : vector<1x32xf32> to vector<8x32xf32>
    %5 = arith.addf %2, %4 : vector<8x32xf32>
    %c0_5 = arith.constant 0 : index
    %c0_6 = arith.constant 0 : index
    %6 = vector.load %arg4[%c0_5, %c0_6] : memref<8x32xf32, #tpu.memory_space<vmem>>, vector<8x32xf32>
    tpu.vector_store %arg4[%c0_5, %c0_6], %5 {strides = array<i32>} : memref<8x32xf32, #tpu.memory_space<vmem>>, vector<8x32xf32>,
    return
  }
  func.func @transform_0(%arg0: i32) -> (i32, i32) {
    %c0_i32 = arith.constant 0 : i32
    %c0_i32_0 = arith.constant 0 : i32
    return %arg0, %c0_i32 : i32, i32
  }
  func.func @transform_1(%arg0: i32) -> (i32, i32) {
    %c0_i32 = arith.constant 0 : i32
    %c0_i32_0 = arith.constant 0 : i32
    %c0_i32_1 = arith.constant 0 : i32
    return %c0_i32, %c0_i32_0 : i32, i32
  }
  func.func @transform_2(%arg0: i32) -> (i32, i32) {
    %c0_i32 = arith.constant 0 : i32
    %c0_i32_0 = arith.constant 0 : i32
    %c0_i32_1 = arith.constant 0 : i32
    return %c0_i32, %c0_i32_0 : i32, i32
  }
  func.func @transform_3(%arg0: i32) -> (i32, i32) {
    %c0_i32 = arith.constant 0 : i32
    %c0_i32_0 = arith.constant 0 : i32
    return %arg0, %c0_i32 : i32, i32
  }
}

</mosaic_0001>

<llo_original>
// kernel: patch_embed_forward.1
$region0: #{patch_embed_forward.1}
  #allocation0 [shape = 'u32[]', space=smem, size = 0x4, offset = 0x4, fixed_abs, tag = 'smem constant byte address 0x4 - core index']
  #allocation1 [shape = 'u32[144,128]{1,0:T(1,128)}', space=vmem, size = 0x12000, scoped, tag = 'internal scratch']
  %s0 = inlined_call_operand.vmem [shape: f32[32,64], index: 0, kind: input, shape index: {}]
  %s1 = inlined_call_operand.vmem [shape: f32[64,32], index: 1, kind: input, shape index: {}]
  %s2 = inlined_call_operand.vmem [shape: f32[1,32], index: 2, kind: input, shape index: {}]
  %s3 = inlined_call_operand.hbm [shape: f32[32,32], index: 3, kind: output, shape index: {}]
  %s4 = sld [smem:[#allocation0]]
  $region45: #{patch_embed_forward.1} parent=0
    _
  %s6 = ssub.s32 1, %s4
  %s7 = scalar_select 0, %s6, %s4
  $region1: #{patch_embed_forward.1} parent=0
    #allocation2 [shape = 'u8[8192]{0}', space=vmem, size = 0x2000, scoped, tag = 'output window, operand 0']
    #allocation3 [shape = 's32[2]{0}', space=sflag, size = 0x8, scoped, tag = 'scoped memory for patch_embed_forward.1']
    %8 = vsyncpa [#allocation3], 0
    %s9 = scalar_lea.sflag [#allocation3], 1
    %10 = vsyncpa %s9, 0
    loop: start=0, step=1, limit=6
    $region2: #{patch_embed_forward.1} parent=1 // loop_pre_header
      _
    $region3: #{patch_embed_forward.1} parent=1 // loop_header
      %s12 = sphi 0, %s16
      %p13 = scmp.ge.s32.totalorder %s12, 6
      %s22 = sphi 0, %s24
      %s25 = sphi 0, %s22
      %s26 = sphi 0, %s25
      %s42 = sphi 0, %s26
      %s46 = sphi 0, %s46
      %s48 = sphi 0, %s46
      %s49 = sphi 0, %s48
      %s63 = sphi 0, %s49
      %s67 = sphi 0, %s67
      %s69 = sphi 0, %s67
      %s70 = sphi 0, %s69
      %s84 = sphi 0, %s70
      %s90 = sphi 0, %s92
      %s93 = sphi 0, %s90
      %s94 = sphi 0, %s93
      %s110 = sphi 0, %s94
    $region4: #{patch_embed_forward.1} parent=1 // loop_header_branch
      %15 = sbr.rel (%p13) target = $region8
    $region5: #{patch_embed_forward.1} parent=1 // loop_body
      %s17 = ssub.s32 %s12, 1
      %s18 = ssub.s32 %s12, 2
      %s19 = sadd.s32 %s12, 1
      %s20 = ssub.s32 %s12, %s19
      %p21 = scmp.eq.s32.totalorder %s20, 0
      %s23 = sadd.s32 %s22, 1
      %s24 = scalar_select %p21, %s22, %s23
      %p27 = pneg %p21
      %p28 = scmp.eq.s32.totalorder %s12, 3
      %p29 = por %p27, %p28
      %p30 = scmp.ne.s32.totalorder %s22, %s25
      %p31 = scmp.eq.s32.totalorder %s12, 0
      %p32 = por %p30, %p31
      %p33 = scmp.ne.s32.totalorder %s22, %s25
      %p34 = scmp.eq.s32.totalorder %s17, 3
      %p35 = por %p33, %p34
      %p36 = scmp.ne.s32.totalorder %s25, %s26
      %p37 = scmp.eq.s32.totalorder %s17, 0
      %p38 = por %p36, %p37
      %p39 = scmp.ne.s32.totalorder %s25, %s26
      %p40 = scmp.eq.s32.totalorder %s18, 3
      %p41 = por %p39, %p40
      %p43 = scmp.ne.s32.totalorder %s26, %s42
      %p44 = scmp.eq.s32.totalorder %s18, 0
      %p45 = por %p43, %p44
      %s47 = sadd.s32 %s46, 1
      %p50 = scmp.eq.s32.totalorder %s12, 3
      %p51 = scmp.ne.s32.totalorder %s46, %s48
      %p52 = scmp.eq.s32.totalorder %s12, 0
      %p53 = por %p51, %p52
      %p54 = scmp.ne.s32.totalorder %s46, %s48
      %p55 = scmp.eq.s32.totalorder %s17, 3
      %p56 = por %p54, %p55
      %p57 = scmp.ne.s32.totalorder %s48, %s49
      %p58 = scmp.eq.s32.totalorder %s17, 0
      %p59 = por %p57, %p58
      %p60 = scmp.ne.s32.totalorder %s48, %s49
      %p61 = scmp.eq.s32.totalorder %s18, 3
      %p62 = por %p60, %p61
      %p64 = scmp.ne.s32.totalorder %s49, %s63
      %p65 = scmp.eq.s32.totalorder %s18, 0
      %p66 = por %p64, %p65
      %s68 = sadd.s32 %s67, 1
      %p71 = scmp.eq.s32.totalorder %s12, 3
      %p72 = scmp.ne.s32.totalorder %s67, %s69
      %p73 = scmp.eq.s32.totalorder %s12, 0
      %p74 = por %p72, %p73
      %p75 = scmp.ne.s32.totalorder %s67, %s69
      %p76 = scmp.eq.s32.totalorder %s17, 3
      %p77 = por %p75, %p76
      %p78 = scmp.ne.s32.totalorder %s69, %s70
      %p79 = scmp.eq.s32.totalorder %s17, 0
      %p80 = por %p78, %p79
      %p81 = scmp.ne.s32.totalorder %s69, %s70
      %p82 = scmp.eq.s32.totalorder %s18, 3
      %p83 = por %p81, %p82
      %p85 = scmp.ne.s32.totalorder %s70, %s84
      %p86 = scmp.eq.s32.totalorder %s18, 0
      %p87 = por %p85, %p86
      %s88 = ssub.s32 %s12, %s19
      %p89 = scmp.eq.s32.totalorder %s88, 0
      %s91 = sadd.s32 %s90, 1
      %s92 = scalar_select %p89, %s90, %s91
      %p95 = pneg %p89
      %p96 = scmp.eq.s32.totalorder %s12, 3
      %p97 = por %p95, %p96
      %p98 = scmp.ne.s32.totalorder %s90, %s93
      %p99 = scmp.eq.s32.totalorder %s12, 0
      %p100 = por %p98, %p99
      %p101 = scmp.ne.s32.totalorder %s90, %s93
      %p102 = scmp.eq.s32.totalorder %s17, 3
      %p103 = por %p101, %p102
      %p104 = scmp.ne.s32.totalorder %s93, %s94
      %p105 = scmp.eq.s32.totalorder %s17, 0
      %p106 = por %p104, %p105
      %p107 = scmp.ne.s32.totalorder %s93, %s94
      %p108 = scmp.eq.s32.totalorder %s18, 3
      %p109 = por %p107, %p108
      %p111 = scmp.ne.s32.totalorder %s94, %s110
      %p112 = scmp.eq.s32.totalorder %s18, 0
      %p113 = por %p111, %p112
      %p114 = scmp.le.s32.totalorder 1, %s12
      %p115 = scmp.lt.s32.totalorder %s12, 5
      %p116 = pnand %p114, %p115
      %p117 = pneg %p116
      // Predicated region
      $region9: #{patch_embed_forward.1} parent=5 // pred_check
        _
      $region10: #{patch_embed_forward.1} parent=5 // pred_check_branch
        %119 = sbr.rel (%p116) target = $region12
      $region11: #{patch_embed_forward.1} parent=5 // pred_region
        %s120 = ssub.s32 %s12, 1
        // Predicated region
        $region13: #{patch_embed_forward.1} parent=11 // pred_check
          %p121 = pneg %p59
        $region14: #{patch_embed_forward.1} parent=11 // pred_check_branch
          %123 = sbr.rel (%p121) target = $region16
        $region15: #{patch_embed_forward.1} parent=11 // pred_region
          _
        $region16: #{patch_embed_forward.1} parent=11 // pred_fallthru
          _
        // Predicated region
        $region17: #{patch_embed_forward.1} parent=11 // pred_check
          %p124 = pneg %p80
        $region18: #{patch_embed_forward.1} parent=11 // pred_check_branch
          %126 = sbr.rel (%p124) target = $region20
        $region19: #{patch_embed_forward.1} parent=11 // pred_region
          _
        $region20: #{patch_embed_forward.1} parent=11 // pred_fallthru
          _
      $region12: #{patch_embed_forward.1} parent=5 // pred_fallthru
        _
      %p127 = scmp.lt.s32.totalorder %s12, 4
      // Predicated region
      $region21: #{patch_embed_forward.1} parent=5 // pred_check
        %p128 = pneg %p127
      $region22: #{patch_embed_forward.1} parent=5 // pred_check_branch
        %130 = sbr.rel (%p128) target = $region24
      $region23: #{patch_embed_forward.1} parent=5 // pred_region
        // Predicated region
        $region25: #{patch_embed_forward.1} parent=23 // pred_check
          %p131 = pneg %p32
        $region26: #{patch_embed_forward.1} parent=23 // pred_check_branch
          %133 = sbr.rel (%p131) target = $region28
        $region27: #{patch_embed_forward.1} parent=23 // pred_region
          %p134 = scmp.lt.s32.totalorder %s12, 3
          %s135 = scalar_select %p134, %s12, 3
          %s136 = smul.addr %s135, 8
          %s137 = scalar_lea.vmem %s0, %s136
        $region28: #{patch_embed_forward.1} parent=23 // pred_fallthru
          _
      $region24: #{patch_embed_forward.1} parent=5 // pred_fallthru
        _
      %p138 = scmp.le.s32.totalorder 1, %s12
      %p139 = scmp.lt.s32.totalorder %s12, 5
      %p140 = pnand %p138, %p139
      %p141 = pneg %p140
      // Predicated region
      $region29: #{patch_embed_forward.1} parent=5 // pred_check
        _
      $region30: #{patch_embed_forward.1} parent=5 // pred_check_branch
        %143 = sbr.rel (%p140) target = $region32
      $region31: #{patch_embed_forward.1} parent=5 // pred_region
        %s144 = ssub.s32 %s12, 1
        %p145 = scmp.lt.s32.totalorder %s17, 3
        %s146 = scalar_select %p145, %s17, 3
        %s147 = smul.addr %s146, 8
        %s148 = scalar_lea.vmem %s0, %s147
        %p149 = pneg %p38
        %p150 = pneg %p35
        %p151 = pneg %p59
        %p152 = pneg %p56
        %p153 = pneg %p80
        %p154 = pneg %p77
        %p155 = pneg %p106
        %p156 = pneg %p103
        %s157 = sand.u32 %s93, 1
        %s158 = scalar_lea.sflag [#allocation3], %s157
        %s159 = sand.u32 %s93, 1
        %s160 = smul.addr %s159, 8
        %s161 = scalar_lea.vmem [#allocation2], %s160
        %p162 = scmp.lt.s32.totalorder %s17, 3
        %s163 = scalar_select %p162, %s17, 3
        %s164 = smul.addr %s163, 8
        %s165 = scalar_lea.vmem %s0, %s164
        %v166 = vld [vmem:[%s165] sm:$0xff]
        %v167 = vld [vmem:[%s1] sm:$0xff]
        %v168 = vld [vmem:[%s1 + $0x8] sm:$0xff]
        %v169 = vld [vmem:[%s1 + $0x10] sm:$0xff]
        %v170 = vld [vmem:[%s1 + $0x18] sm:$0xff]
        %v171 = vld [vmem:[%s1 + $0x20] sm:$0xff]
        %v172 = vld [vmem:[%s1 + $0x28] sm:$0xff]
        %v173 = vld [vmem:[%s1 + $0x30] sm:$0xff]
        %v174 = vld [vmem:[%s1 + $0x38] sm:$0xff]
        %v175 = vld [vmem:[%s2] sm:$0x1]
        %v177 = vlaneseq
        %v178 = vshrl.u32 %v177, 7
        %v179 = vsub.s32 0, %v178
        %v180 = vrot.slane %v175, %v179
        %vm182 = vcmask 523264
        %v184 = vsel %vm182, %v166, 0
        %186 = vmatprep.subr.mxu0 0.0
        %187 = vmatpush1.msra.mxu0 %v167
        %188 = vmatprep.subr.mxu0 0.0
        %189 = vmatpush1.msra.mxu0 %v168
        %190 = vmatprep.subr.mxu0 0.0
        %191 = vmatpush1.msra.mxu0 %v169
        %192 = vmatprep.subr.mxu0 0.0
        %193 = vmatpush1.msra.mxu0 %v170
        %194 = vmatprep.subr.mxu0 0.0
        %195 = vmatpush1.msra.mxu0 %v171
        %196 = vmatprep.subr.mxu0 0.0
        %197 = vmatpush1.msra.mxu0 %v172
        %198 = vmatprep.subr.mxu0 0.0
        %199 = vmatpush1.msra.mxu0 %v173
        %200 = vmatprep.subr.mxu0 0.0
        %201 = vmatpush1.msra.mxu0 %v174
        %202 = vmatprep.subr.mxu0 0.0
        %203 = vmatpush1.msra.mxu0 0.0
        %204 = vmatprep.subr.mxu0 0.0
        %205 = vmatpush1.msra.mxu0 0.0
        %206 = vmatprep.subr.mxu0 0.0
        %207 = vmatpush1.msra.mxu0 0.0
        %208 = vmatprep.subr.mxu0 0.0
        %209 = vmatpush1.msra.mxu0 0.0
        %210 = vmatprep.subr.mxu0 0.0
        %211 = vmatpush1.msra.mxu0 0.0
        %212 = vmatprep.subr.mxu0 0.0
        %213 = vmatpush1.msra.mxu0 0.0
        %214 = vmatprep.subr.mxu0 0.0
        %215 = vmatpush1.msra.mxu0 0.0
        %216 = vmatprep.subr.mxu0 0.0
        %217 = vmatpush1.msra.mxu0 0.0
        %218 = vmatprep.subr.mxu0 0.0
        %219 = vmatpush1.msra.mxu0 0.0
        %220 = vmatprep.subr.mxu0 0.0
        %221 = vmatpush1.msra.mxu0 0.0
        %222 = vmatprep.subr.mxu0 0.0
        %223 = vmatpush1.msra.mxu0 0.0
        %224 = vmatprep.subr.mxu0 0.0
        %225 = vmatpush1.msra.mxu0 0.0
        %226 = vmatprep.subr.mxu0 0.0
        %227 = vmatpush1.msra.mxu0 0.0
        %228 = vmatprep.subr.mxu0 0.0
        %229 = vmatpush1.msra.mxu0 0.0
        %230 = vmatprep.subr.mxu0 0.0
        %231 = vmatpush1.msra.mxu0 0.0
        %232 = vmatprep.subr.mxu0 0.0
        %233 = vmatpush1.msra.mxu0 0.0
        %234 = vmatprep.subr.mxu0 0.0
        %235 = vmatpush1.msra.mxu0 0.0
        %236 = vmatprep.subr.mxu0 0.0
        %237 = vmatpush1.msra.mxu0 0.0
        %238 = vmatprep.subr.mxu0 0.0
        %239 = vmatpush1.msra.mxu0 0.0
        %240 = vmatprep.subr.mxu0 0.0
        %241 = vmatpush1.msra.mxu0 0.0
        %242 = vmatprep.subr.mxu0 0.0
        %243 = vmatpush1.msra.mxu0 0.0
        %244 = vmatprep.subr.mxu0 0.0
        %245 = vmatpush1.msra.mxu0 0.0
        %246 = vmatprep.subr.mxu0 0.0
        %247 = vmatpush1.msra.mxu0 0.0
        %248 = vmatprep.subr.mxu0 0.0
        %249 = vmatpush1.msra.mxu0 0.0
        %250 = vmatprep.mubr.f32.mxu0 0.0
        %251 = vmatmul.mubr.f32.gmra.mrb[0].mxu0 %v184
        %v252 = vpop.f32.mrb[0].mxu0
        %v253 = vadd.f32 %v180, %v252
        %v254 = vpop.f32.mrb[0].mxu0
        %255 = vdwg.mxu0
        %vm256 = vcmask 261120
        %257 = vst.msk [vmem:[%s161] sm:$0xff] %vm256, %v253
        %s258 = sand.u32 %s93, 1
        %s259 = scalar_lea.sflag [#allocation3], %s258
        %s260 = sand.u32 %s93, 1
        %s261 = smul.addr %s260, 8
        %s262 = scalar_lea.vmem [#allocation2], %s261
        // Predicated region
        $region33: #{patch_embed_forward.1} parent=31 // pred_check
          %p263 = pneg %p103
        $region34: #{patch_embed_forward.1} parent=31 // pred_check_branch
          %265 = sbr.rel (%p263) target = $region36
        $region35: #{patch_embed_forward.1} parent=31 // pred_region
          %s267 = ssub.s32 128, 128
          %268 = vsyncadd %s259, %s267
          %s269 = smul.addr %s17, 128
          %s270 = scalar_lea.hbm %s3, %s269
          %s272 = sshll.u32 %s262, 4
          %s273 = int_to_ptr.vmem [resolvable:$true] %s272
          %275 = dma.vmem_to_hbm [thread:$0]  %s273, 128, %s270, %s259
        $region36: #{patch_embed_forward.1} parent=31 // pred_fallthru
          _
      $region32: #{patch_embed_forward.1} parent=5 // pred_fallthru
        _
      %p276 = scmp.le.s32.totalorder 2, %s12
      // Predicated region
      $region37: #{patch_embed_forward.1} parent=5 // pred_check
        %p277 = pneg %p276
      $region38: #{patch_embed_forward.1} parent=5 // pred_check_branch
        %279 = sbr.rel (%p277) target = $region40
      $region39: #{patch_embed_forward.1} parent=5 // pred_region
        %s280 = ssub.s32 %s12, 2
        // Predicated region
        $region41: #{patch_embed_forward.1} parent=39 // pred_check
          %p281 = pneg %p109
        $region42: #{patch_embed_forward.1} parent=39 // pred_check_branch
          %283 = sbr.rel (%p281) target = $region44
        $region43: #{patch_embed_forward.1} parent=39 // pred_region
          %s284 = sand.u32 %s94, 1
          %s285 = scalar_lea.sflag [#allocation3], %s284
          %s286 = sand.u32 %s94, 1
          %s287 = smul.addr %s286, 8
          %s288 = scalar_lea.vmem [#allocation2], %s287
          %289 = dma.done %s285, 128
        $region44: #{patch_embed_forward.1} parent=39 // pred_fallthru
          _
      $region40: #{patch_embed_forward.1} parent=5 // pred_fallthru
        _
    $region6: #{patch_embed_forward.1} parent=1 // loop_footer
      %s16 = sadd.s32 1, %s12
    $region7: #{patch_embed_forward.1} parent=1 // loop_footer_branch
      %11 = sbr.rel target = $region3
    $region8: #{patch_embed_forward.1} parent=1 // loop_exit
      _
    %290 = vsyncpa [#allocation3], 1
    %s291 = scalar_lea.sflag [#allocation3], 1
    %292 = vsyncpa %s291, 1

</llo_original>
